<compile_context>
chip_gen: v7x
topology: tpu7x:2x2x1
jax: 0.10.0
libtpu: 0.0.40
codegen_flags: <defaults>
</compile_context>

<pallas_src>
import functools

import jax
import jax.numpy as jnp
from jax import lax
from jax.experimental import pallas as pl
from jax.experimental.pallas import tpu as pltpu

_LANE = 128


def _batch_swap_noise_kernel(seed_ref, x_ref, o_ref, *, threshold, batch, f_total):
    blk_b, blk_f = x_ref.shape

    # ---- one hash-based random draw per element (tiling-invariant) ---------
    row_u = lax.broadcasted_iota(jnp.uint32, (blk_b, blk_f), 0)
    col_u = lax.broadcasted_iota(jnp.uint32, (blk_b, blk_f), 1)
    col_off = (pl.program_id(0) * blk_f).astype(jnp.uint32)
    idx = row_u * jnp.uint32(f_total) + (col_u + col_off)  # global flat index

    h = idx ^ (seed_ref[0].astype(jnp.uint32) * jnp.uint32(0x9E3779B9))
    h = h ^ (h >> 16)                     # murmur3 fmix32
    h = h * jnp.uint32(0x85EBCA6B)
    h = h ^ (h >> 13)
    h = h * jnp.uint32(0xC2B2AE35)
    h = h ^ (h >> 16)

    # mask = rand < prob  (high 16 bits); r = floor(rand2 * B)  (low 16 bits)
    hi = (h >> 16).astype(jnp.int32)                                   # [0, 65536)
    mask = (hi < threshold).astype(jnp.int32)
    r = (((h & jnp.uint32(0xFFFF)) * jnp.uint32(batch)) >> 16).astype(jnp.int32)

    # Source row per element: row + r*mask, wrapped once (exactly the
    # "idx[idx >= nelement] -= nelement" of the PyTorch module).
    row = lax.broadcasted_iota(jnp.int32, (blk_b, blk_f), 0)
    t = row + r * mask
    t = jnp.where(t >= batch, t - batch, t)

    # ---- per-element gather along the batch (sublane) axis ------------------
    # Select-accumulate over source rows; b == 0 is folded into the init so the
    # tile is never read wholesale just to seed the accumulator.
    res = jnp.broadcast_to(x_ref[pl.ds(0, 1), :], (blk_b, blk_f))
    if batch <= 32:
        for b in range(1, batch):  # static trip count -> fully unrolled
            res = jnp.where(t == b, x_ref[pl.ds(b, 1), :], res)
    else:
        # TODO(synk): for large batch replace this O(B) select scan with a real
        # sublane gather (jnp.take_along_axis along axis 0 / DMA gather).
        def body(b, acc):
            return jnp.where(t == b, x_ref[pl.ds(b, 1), :], acc)

        res = lax.fori_loop(1, batch, body, res, unroll=8)

    o_ref[...] = res


def batch_swap_noise(x, seed, prob, training=True, tile_f=512):
    """JAX/Pallas equivalent of BatchSwapNoise(prob).forward(x), x of shape (B, F)."""
    if not training:
        return x

    B, F = x.shape

    # Lane-dense feature tile: multiple of 128, no bigger than the (aligned)
    # feature count, and capped so each (B, TILE_F) f32 temporary stays ~<=2 MiB
    # (fits v7x's 32 MiB scoped-VMEM default with double-buffered I/O).
    f_aligned = pl.cdiv(F, _LANE) * _LANE
    cap = max(_LANE, ((2 * 1024 * 1024) // max(4 * B, 1)) // _LANE * _LANE)
    tile_f = max(_LANE, (tile_f // _LANE) * _LANE)
    TILE_F = min(tile_f, f_aligned, cap)

    n_blocks = pl.cdiv(F, TILE_F)
    F_pad = n_blocks * TILE_F
    x_p = x if F_pad == F else jnp.pad(x, ((0, 0), (0, F_pad - F)))

    threshold = int(round(float(prob) * 65536.0))  # mask = hi16 < threshold
    kernel = functools.partial(
        _batch_swap_noise_kernel, threshold=threshold, batch=B, f_total=F_pad
    )
    seed_arr = jnp.asarray([seed], dtype=jnp.int32)

    out = pl.pallas_call(
        kernel,
        out_shape=jax.ShapeDtypeStruct((B, F_pad), x.dtype),
        grid=(n_blocks,),
        in_specs=[
            pl.BlockSpec(memory_space=pltpu.MemorySpace.SMEM),      # seed scalar
            pl.BlockSpec((B, TILE_F), lambda j: (0, j)),            # x tile
        ],
        out_specs=pl.BlockSpec((B, TILE_F), lambda j: (0, j)),
        compiler_params=pltpu.CompilerParams(
            dimension_semantics=("parallel",),
            vmem_limit_bytes=32 * 1024 * 1024,
        ),
    )(seed_arr, x_p)

    return out if F_pad == F else out[:, :F]


if __name__ == "__main__":
    import numpy as np

    key = jax.random.PRNGKey(0)
    B, F = 8, 128  # small tabular-style input (batch, features)
    x = jax.random.normal(key, (B, F), dtype=jnp.float32)

    # Training mode: swap noise applied.
    out = jax.block_until_ready(batch_swap_noise(x, seed=42, prob=0.15, training=True))
    assert out.shape == x.shape and out.dtype == x.dtype

    # Sanity: swap-noise only permutes within columns, so every output value
    # must come from the SAME column of the input.
    xn, on = np.asarray(x), np.asarray(out)
    for j in range(F):
        assert np.all(np.isin(on[:, j], xn[:, j])), f"column {j} corrupted"
    # Some elements should actually have been swapped with prob=0.15.
    assert not np.array_equal(xn, on)

    # Eval mode: identity.
    out_eval = jax.block_until_ready(batch_swap_noise(x, seed=42, prob=0.15, training=False))
    assert np.array_equal(np.asarray(out_eval), xn)

    print("KERNEL_OK")
</pallas_src>

<mosaic_0001>
module attributes {stable_mosaic.version = 11 : i64} {
  func.func @_batch_swap_noise_kernel(%arg0: i32, %arg1: memref<1xi32, #tpu.memory_space<smem>>, %arg2: memref<8x128xf32, #tpu.memory_space<vmem>>, %arg3: memref<8x128xf32, #tpu.memory_space<vmem>>) attributes {dimension_semantics = [#tpu.dimension_semantics<parallel>], iteration_bounds = array<i64: 1>, scalar_prefetch = 0 : i64, scratch_operands = 0 : i64, tpu.core_type = #tpu.core_type<tc>, window_params = [{transform_indices = @transform_0, window_bounds = array<i64: 1>}, {transform_indices = @transform_1, window_bounds = array<i64: 8, 128>}, {transform_indices = @transform_2, window_bounds = array<i64: 8, 128>}]} {
    %0 = tpu.iota {dimensions = array<i32: 0>} : vector<8x128xi32>
    %1 = tpu.iota {dimensions = array<i32: 1>} : vector<8x128xi32>
    %c128_i32 = arith.constant 128 : i32
    %2 = arith.muli %arg0, %c128_i32 : i32
    %c128_i32_0 = arith.constant 128 : i32
    %3 = vector.broadcast %c128_i32_0 : i32 to vector<8x128xi32>
    %4 = arith.muli %0, %3 : vector<8x128xi32>
    %5 = vector.broadcast %2 : i32 to vector<8x128xi32>
    %6 = arith.addi %1, %5 : vector<8x128xi32>
    %7 = arith.addi %4, %6 : vector<8x128xi32>
    %c0 = arith.constant 0 : index
    %8 = memref.load %arg1[%c0] : memref<1xi32, #tpu.memory_space<smem>>
    %c-1640531527_i32 = arith.constant -1640531527 : i32
    %9 = arith.muli %8, %c-1640531527_i32 : i32
    %10 = vector.broadcast %9 : i32 to vector<8x128xi32>
    %11 = arith.xori %7, %10 : vector<8x128xi32>
    %c16_i32 = arith.constant 16 : i32
    %12 = vector.broadcast %c16_i32 : i32 to vector<8x128xi32>
    %13 = arith.shrui %11, %12 : vector<8x128xi32>
    %14 = arith.xori %11, %13 : vector<8x128xi32>
    %c-2048144789_i32 = arith.constant -2048144789 : i32
    %15 = vector.broadcast %c-2048144789_i32 : i32 to vector<8x128xi32>
    %16 = arith.muli %14, %15 : vector<8x128xi32>
    %c13_i32 = arith.constant 13 : i32
    %17 = vector.broadcast %c13_i32 : i32 to vector<8x128xi32>
    %18 = arith.shrui %16, %17 : vector<8x128xi32>
    %19 = arith.xori %16, %18 : vector<8x128xi32>
    %c-1028477387_i32 = arith.constant -1028477387 : i32
    %20 = vector.broadcast %c-1028477387_i32 : i32 to vector<8x128xi32>
    %21 = arith.muli %19, %20 : vector<8x128xi32>
    %c16_i32_1 = arith.constant 16 : i32
    %22 = vector.broadcast %c16_i32_1 : i32 to vector<8x128xi32>
    %23 = arith.shrui %21, %22 : vector<8x128xi32>
    %24 = arith.xori %21, %23 : vector<8x128xi32>
    %c16_i32_2 = arith.constant 16 : i32
    %25 = vector.broadcast %c16_i32_2 : i32 to vector<8x128xi32>
    %26 = arith.shrui %24, %25 : vector<8x128xi32>
    %c9830_i32 = arith.constant 9830 : i32
    %27 = vector.broadcast %c9830_i32 : i32 to vector<8x128xi32>
    %28 = arith.cmpi slt, %26, %27 : vector<8x128xi32>
    %29 = arith.extui %28 : vector<8x128xi1> to vector<8x128xi32>
    %c65535_i32 = arith.constant 65535 : i32
    %30 = vector.broadcast %c65535_i32 : i32 to vector<8x128xi32>
    %31 = arith.andi %24, %30 : vector<8x128xi32>
    %c8_i32 = arith.constant 8 : i32
    %32 = vector.broadcast %c8_i32 : i32 to vector<8x128xi32>
    %33 = arith.muli %31, %32 : vector<8x128xi32>
    %c16_i32_3 = arith.constant 16 : i32
    %34 = vector.broadcast %c16_i32_3 : i32 to vector<8x128xi32>
    %35 = arith.shrui %33, %34 : vector<8x128xi32>
    %36 = tpu.iota {dimensions = array<i32: 0>} : vector<8x128xi32>
    %37 = arith.muli %35, %29 : vector<8x128xi32>
    %38 = arith.addi %36, %37 : vector<8x128xi32>
    %c8_i32_4 = arith.constant 8 : i32
    %39 = vector.broadcast %c8_i32_4 : i32 to vector<8x128xi32>
    %40 = arith.cmpi sge, %38, %39 : vector<8x128xi32>
    %c8_i32_5 = arith.constant 8 : i32
    %41 = vector.broadcast %c8_i32_5 : i32 to vector<8x128xi32>
    %42 = arith.subi %38, %41 : vector<8x128xi32>
    %43 = arith.select %40, %42, %38 : vector<8x128xi1>, vector<8x128xi32>
    %c0_6 = arith.constant 0 : index
    %c0_7 = arith.constant 0 : index
    %44 = vector.load %arg2[%c0_6, %c0_7] : memref<8x128xf32, #tpu.memory_space<vmem>>, vector<1x128xf32>
    %45 = vector.shape_cast %44 : vector<1x128xf32> to vector<1x128xf32>
    %46 = vector.broadcast %45 : vector<1x128xf32> to vector<8x128xf32>
    %c1_i32 = arith.constant 1 : i32
    %47 = vector.broadcast %c1_i32 : i32 to vector<8x128xi32>
    %48 = arith.cmpi eq, %43, %47 : vector<8x128xi32>
    %c1 = arith.constant 1 : index
    %c0_8 = arith.constant 0 : index
    %49 = vector.load %arg2[%c1, %c0_8] : memref<8x128xf32, #tpu.memory_space<vmem>>, vector<1x128xf32>
    %50 = vector.shape_cast %49 : vector<1x128xf32> to vector<1x128xf32>
    %51 = vector.broadcast %50 : vector<1x128xf32> to vector<8x128xf32>
    %52 = arith.select %48, %51, %46 : vector<8x128xi1>, vector<8x128xf32>
    %c2_i32 = arith.constant 2 : i32
    %53 = vector.broadcast %c2_i32 : i32 to vector<8x128xi32>
    %54 = arith.cmpi eq, %43, %53 : vector<8x128xi32>
    %c2 = arith.constant 2 : index
    %c0_9 = arith.constant 0 : index
    %55 = vector.load %arg2[%c2, %c0_9] : memref<8x128xf32, #tpu.memory_space<vmem>>, vector<1x128xf32>
    %56 = vector.shape_cast %55 : vector<1x128xf32> to vector<1x128xf32>
    %57 = vector.broadcast %56 : vector<1x128xf32> to vector<8x128xf32>
    %58 = arith.select %54, %57, %52 : vector<8x128xi1>, vector<8x128xf32>
    %c3_i32 = arith.constant 3 : i32
    %59 = vector.broadcast %c3_i32 : i32 to vector<8x128xi32>
    %60 = arith.cmpi eq, %43, %59 : vector<8x128xi32>
    %c3 = arith.constant 3 : index
    %c0_10 = arith.constant 0 : index
    %61 = vector.load %arg2[%c3, %c0_10] : memref<8x128xf32, #tpu.memory_space<vmem>>, vector<1x128xf32>
    %62 = vector.shape_cast %61 : vector<1x128xf32> to vector<1x128xf32>
    %63 = vector.broadcast %62 : vector<1x128xf32> to vector<8x128xf32>
    %64 = arith.select %60, %63, %58 : vector<8x128xi1>, vector<8x128xf32>
    %c4_i32 = arith.constant 4 : i32
    %65 = vector.broadcast %c4_i32 : i32 to vector<8x128xi32>
    %66 = arith.cmpi eq, %43, %65 : vector<8x128xi32>
    %c4 = arith.constant 4 : index
    %c0_11 = arith.constant 0 : index
    %67 = vector.load %arg2[%c4, %c0_11] : memref<8x128xf32, #tpu.memory_space<vmem>>, vector<1x128xf32>
    %68 = vector.shape_cast %67 : vector<1x128xf32> to vector<1x128xf32>
    %69 = vector.broadcast %68 : vector<1x128xf32> to vector<8x128xf32>
    %70 = arith.select %66, %69, %64 : vector<8x128xi1>, vector<8x128xf32>
    %c5_i32 = arith.constant 5 : i32
    %71 = vector.broadcast %c5_i32 : i32 to vector<8x128xi32>
    %72 = arith.cmpi eq, %43, %71 : vector<8x128xi32>
    %c5 = arith.constant 5 : index
    %c0_12 = arith.constant 0 : index
    %73 = vector.load %arg2[%c5, %c0_12] : memref<8x128xf32, #tpu.memory_space<vmem>>, vector<1x128xf32>
    %74 = vector.shape_cast %73 : vector<1x128xf32> to vector<1x128xf32>
    %75 = vector.broadcast %74 : vector<1x128xf32> to vector<8x128xf32>
    %76 = arith.select %72, %75, %70 : vector<8x128xi1>, vector<8x128xf32>
    %c6_i32 = arith.constant 6 : i32
    %77 = vector.broadcast %c6_i32 : i32 to vector<8x128xi32>
    %78 = arith.cmpi eq, %43, %77 : vector<8x128xi32>
    %c6 = arith.constant 6 : index
    %c0_13 = arith.constant 0 : index
    %79 = vector.load %arg2[%c6, %c0_13] : memref<8x128xf32, #tpu.memory_space<vmem>>, vector<1x128xf32>
    %80 = vector.shape_cast %79 : vector<1x128xf32> to vector<1x128xf32>
    %81 = vector.broadcast %80 : vector<1x128xf32> to vector<8x128xf32>
    %82 = arith.select %78, %81, %76 : vector<8x128xi1>, vector<8x128xf32>
    %c7_i32 = arith.constant 7 : i32
    %83 = vector.broadcast %c7_i32 : i32 to vector<8x128xi32>
    %84 = arith.cmpi eq, %43, %83 : vector<8x128xi32>
    %c7 = arith.constant 7 : index
    %c0_14 = arith.constant 0 : index
    %85 = vector.load %arg2[%c7, %c0_14] : memref<8x128xf32, #tpu.memory_space<vmem>>, vector<1x128xf32>
    %86 = vector.shape_cast %85 : vector<1x128xf32> to vector<1x128xf32>
    %87 = vector.broadcast %86 : vector<1x128xf32> to vector<8x128xf32>
    %88 = arith.select %84, %87, %82 : vector<8x128xi1>, vector<8x128xf32>
    %c0_15 = arith.constant 0 : index
    %c0_16 = arith.constant 0 : index
    %89 = vector.load %arg3[%c0_15, %c0_16] : memref<8x128xf32, #tpu.memory_space<vmem>>, vector<8x128xf32>
    tpu.vector_store %arg3[%c0_15, %c0_16], %88 {strides = array<i32>} : memref<8x128xf32, #tpu.memory_space<vmem>>, vector<8x128xf32>,
    return
  }
  func.func @transform_0(%arg0: i32) -> i32 {
    %c0_i32 = arith.constant 0 : i32
    %c0_i32_0 = arith.constant 0 : i32
    return %c0_i32 : i32
  }
  func.func @transform_1(%arg0: i32) -> (i32, i32) {
    %c0_i32 = arith.constant 0 : i32
    %c0_i32_0 = arith.constant 0 : i32
    return %c0_i32, %arg0 : i32, i32
  }
  func.func @transform_2(%arg0: i32) -> (i32, i32) {
    %c0_i32 = arith.constant 0 : i32
    %c0_i32_0 = arith.constant 0 : i32
    return %c0_i32, %arg0 : i32, i32
  }
}

</mosaic_0001>

<llo_original>
// kernel: tpu_custom_call.1
$region0: #{tpu_custom_call.1}
  #allocation0 [shape = 'u32[]', space=smem, size = 0x4, offset = 0x4, fixed_abs, tag = 'smem constant byte address 0x4 - core index']
  #allocation1 [shape = 'u32[144,128]{1,0:T(1,128)}', space=vmem, size = 0x12000, scoped, tag = 'internal scratch']
  #allocation2 [shape = 's32[1]{0:T(128)S(6)}', space=smem, size = 0x200, scoped, tag = 'scoped memory for tpu_custom_call.1']
  %s0 = inlined_call_operand.<no memory space> [shape: s32[1], index: 0, kind: input, shape index: {}]
  %s1 = inlined_call_operand.hbm [shape: f32[8,128], index: 1, kind: input, shape index: {}]
  %s2 = inlined_call_operand.hbm [shape: f32[8,128], index: 2, kind: output, shape index: {}]
  %s3 = sld [smem:[#allocation0]]
  $region22: #{tpu_custom_call.1} parent=0
    _
  %s5 = ssub.s32 1, %s3
  %s6 = scalar_select 0, %s5, %s3
  %7 = sst [smem:[#allocation2]] %s0
  $region1: #{tpu_custom_call.1} parent=0
    #allocation3 [shape = 'u8[4096]{0}', space=vmem, size = 0x1000, scoped, tag = 'input window, operand 1, single buffered']
    #allocation4 [shape = 's32[1]{0}', space=sflag, size = 0x4, scoped, tag = 'scoped memory for tpu_custom_call.1']
    #allocation5 [shape = 's32[1]{0}', space=sflag, size = 0x4, scoped, tag = 'scoped memory for tpu_custom_call.1']
    #allocation6 [shape = 'u8[4096]{0}', space=vmem, size = 0x1000, scoped, tag = 'output window, operand 0, single buffered']
    %8 = vsyncpa [#allocation4], 0
    %9 = vsyncpa [#allocation5], 0
    // Predicated region
    $region2: #{tpu_custom_call.1} parent=1 // pred_check
      _
    $region3: #{tpu_custom_call.1} parent=1 // pred_check_branch
      %11 = sbr.rel (0) target = $region5
    $region4: #{tpu_custom_call.1} parent=1 // pred_region
      _
    $region5: #{tpu_custom_call.1} parent=1 // pred_fallthru
      _
    // Predicated region
    $region6: #{tpu_custom_call.1} parent=1 // pred_check
      _
    $region7: #{tpu_custom_call.1} parent=1 // pred_check_branch
      %13 = sbr.rel (0) target = $region9
    $region8: #{tpu_custom_call.1} parent=1 // pred_region
      %s15 = ssub.s32 128, 128
      %16 = vsyncadd [#allocation4], %s15
      %s18 = sshll.u32 [#allocation3], 4
      %s19 = int_to_ptr.vmem [resolvable:$true] %s18
      %21 = dma.hbm_to_vmem [thread:$0]  %s1, 128, %s19, [#allocation4]
    $region9: #{tpu_custom_call.1} parent=1 // pred_fallthru
      _
    // Predicated region
    $region10: #{tpu_custom_call.1} parent=1 // pred_check
      _
    $region11: #{tpu_custom_call.1} parent=1 // pred_check_branch
      %23 = sbr.rel (0) target = $region13
    $region12: #{tpu_custom_call.1} parent=1 // pred_region
      %24 = dma.done [#allocation4], 128
    $region13: #{tpu_custom_call.1} parent=1 // pred_fallthru
      _
    %v25 = vlaneseq
    %v26 = vshrl.u32 %v25, 7
    %v27 = vlaneseq
    %v28 = vand.u32 %v27, 127
    %s29 = smul.u32 0, 128
    %v30 = vmul.u32 %v26, 128
    %v31 = vstv %s29
    %v32 = vadd.s32 %v28, %v31
    %v33 = vadd.s32 %v30, %v32
    %s34 = sld [smem:[#allocation2]]
    %s35 = smul.u32 %s34, 2654435769
    %v36 = vstv %s35
    %v37 = vxor.u32 %v33, %v36
    %v38 = vshrl.u32 %v37, 16
    %v39 = vxor.u32 %v37, %v38
    %v40 = vmul.u32 %v39, 2246822507
    %v41 = vshrl.u32 %v40, 13
    %v42 = vxor.u32 %v40, %v41
    %v43 = vmul.u32 %v42, 3266489909
    %v44 = vshrl.u32 %v43, 16
    %v45 = vxor.u32 %v43, %v44
    %v46 = vshrl.u32 %v45, 16
    %vm47 = vcmp.lt.s32.totalorder %v46, 9830
    %v48 = vsel %vm47, 1, 0
    %v49 = vand.u32 %v45, 65535
    %v50 = vmul.u32 %v49, 8
    %v51 = vshrl.u32 %v50, 16
    %v52 = vmul.u32 %v51, %v48
    %v53 = vadd.s32 %v26, %v52
    %vm54 = vcmp.ge.s32.totalorder %v53, 8
    %v55 = vsub.s32 %v53, 8
    %v56 = vsel %vm54, %v55, %v53
    %v57 = vld [vmem:[#allocation3] sm:$0x1]
    %v58 = vlaneseq
    %v59 = vshrl.u32 %v58, 7
    %v60 = vsub.s32 0, %v59
    %v61 = vrot.slane %v57, %v60
    %vm62 = vcmp.eq.s32.totalorder %v56, 1
    %v63 = vld [vmem:[#allocation3 + $0x1] sm:$0x1]
    %v64 = vlaneseq
    %v65 = vshrl.u32 %v64, 7
    %v66 = vsub.s32 0, %v65
    %v67 = vrot.slane %v63, %v66
    %v68 = vsel %vm62, %v67, %v61
    %vm69 = vcmp.eq.s32.totalorder %v56, 2
    %v70 = vld [vmem:[#allocation3 + $0x2] sm:$0x1]
    %v71 = vlaneseq
    %v72 = vshrl.u32 %v71, 7
    %v73 = vsub.s32 0, %v72
    %v74 = vrot.slane %v70, %v73
    %v75 = vsel %vm69, %v74, %v68
    %vm76 = vcmp.eq.s32.totalorder %v56, 3
    %v77 = vld [vmem:[#allocation3 + $0x3] sm:$0x1]
    %v78 = vlaneseq
    %v79 = vshrl.u32 %v78, 7
    %v80 = vsub.s32 0, %v79
    %v81 = vrot.slane %v77, %v80
    %v82 = vsel %vm76, %v81, %v75
    %vm83 = vcmp.eq.s32.totalorder %v56, 4
    %v84 = vld [vmem:[#allocation3 + $0x4] sm:$0x1]
    %v85 = vlaneseq
    %v86 = vshrl.u32 %v85, 7
    %v87 = vsub.s32 0, %v86
    %v88 = vrot.slane %v84, %v87
    %v89 = vsel %vm83, %v88, %v82
    %vm90 = vcmp.eq.s32.totalorder %v56, 5
    %v91 = vld [vmem:[#allocation3 + $0x5] sm:$0x1]
    %v92 = vlaneseq
    %v93 = vshrl.u32 %v92, 7
    %v94 = vsub.s32 0, %v93
    %v95 = vrot.slane %v91, %v94
    %v96 = vsel %vm90, %v95, %v89
    %vm97 = vcmp.eq.s32.totalorder %v56, 6
    %v98 = vld [vmem:[#allocation3 + $0x6] sm:$0x1]
    %v99 = vlaneseq
    %v100 = vshrl.u32 %v99, 7
    %v101 = vsub.s32 0, %v100
    %v102 = vrot.slane %v98, %v101
    %v103 = vsel %vm97, %v102, %v96
    %vm104 = vcmp.eq.s32.totalorder %v56, 7
    %v105 = vld [vmem:[#allocation3 + $0x7] sm:$0x1]
    %v106 = vlaneseq
    %v107 = vshrl.u32 %v106, 7
    %v108 = vsub.s32 0, %v107
    %v109 = vrot.slane %v105, %v108
    %v110 = vsel %vm104, %v109, %v103
    %111 = vst [vmem:[#allocation6] sm:$0xff] %v110
    // Predicated region
    $region14: #{tpu_custom_call.1} parent=1 // pred_check
      _
    $region15: #{tpu_custom_call.1} parent=1 // pred_check_branch
      %113 = sbr.rel (0) target = $region17
    $region16: #{tpu_custom_call.1} parent=1 // pred_region
      %s115 = ssub.s32 128, 128
      %116 = vsyncadd [#allocation5], %s115
      %s118 = sshll.u32 [#allocation6], 4
      %s119 = int_to_ptr.vmem [resolvable:$true] %s118
      %121 = dma.vmem_to_hbm [thread:$0]  %s119, 128, %s2, [#allocation5]
    $region17: #{tpu_custom_call.1} parent=1 // pred_fallthru
      _
    // Predicated region
    $region18: #{tpu_custom_call.1} parent=1 // pred_check
      _
    $region19: #{tpu_custom_call.1} parent=1 // pred_check_branch
      %123 = sbr.rel (0) target = $region21
    $region20: #{tpu_custom_call.1} parent=1 // pred_region
      %124 = dma.done [#allocation5], 128
    $region21: #{tpu_custom_call.1} parent=1 // pred_fallthru
      _
    %125 = vsyncpa [#allocation4], 1
    %126 = vsyncpa [#allocation5], 1

</llo_original>
